<compile_context>
chip_gen: v7x
topology: tpu7x:2x2x1
jax: 0.10.0
libtpu: 0.0.40
codegen_flags: <defaults>
</compile_context>

<pallas_src>
import functools

import jax
import jax.numpy as jnp
from jax import lax
from jax.experimental import pallas as pl
from jax.experimental.pallas import tpu as pltpu

_EPS = 1e-5  # PyTorch BatchNorm2d default eps


# ---------------------------------------------------------------------------
# Fused kernel: BN(batch stats) + ReLU + 3x3 conv + bias + residual.
# ---------------------------------------------------------------------------
def _res_part_kernel(img_ref, dep_ref, gamma_t_ref, beta_t_ref, avg_ref,
                     w_up_ref, w_mid_ref, w_dn_ref, bias_t_ref, out_ref,
                     *, h_g, inv_count):
    """All operands are lane-dense "wide" views.

    img_ref / dep_ref : (ROWS, LW)  ROWS = N*H/fold, LW = fold*W*C,
                        lane = g*W*C + w*C + c   (g = sub-row in the wide row)
    gamma_t / beta_t  : (2, LW)     row 0 = image half, row 1 = depth half
    avg_ref           : (LW, LW)    kron(ones(fold*W), eye(C)) channel-average
    w_up/mid/dn       : (2*LW, LW)  block-Toeplitz conv weight for the
                                    previous / same / next wide row
    bias_t            : (1, LW)
    out_ref           : (ROWS, LW)
    """
    img = img_ref[...]                                        # (ROWS, LW) f32
    dep = dep_ref[...]
    rows = img.shape[0]

    # ---- BatchNorm2d batch stats: sublane reduces + ONE MXU matmul ---------
    col = jnp.concatenate(
        [jnp.sum(img, axis=0, keepdims=True),
         jnp.sum(img * img, axis=0, keepdims=True),
         jnp.sum(dep, axis=0, keepdims=True),
         jnp.sum(dep * dep, axis=0, keepdims=True)], axis=0)          # (4, LW)
    stats = jnp.dot(col, avg_ref[...],
                    preferred_element_type=jnp.float32) * inv_count   # (4, LW)
    mean_i, ex2_i = stats[0:1], stats[1:2]
    mean_d, ex2_d = stats[2:3], stats[3:4]
    var_i = jnp.maximum(ex2_i - mean_i * mean_i, 0.0)
    var_d = jnp.maximum(ex2_d - mean_d * mean_d, 0.0)

    # ---- normalize + affine + ReLU per half, then lane-concat the halves ---
    y_i = jnp.maximum((img - mean_i) * lax.rsqrt(var_i + _EPS)
                      * gamma_t_ref[0:1, :] + beta_t_ref[0:1, :], 0.0)
    y_d = jnp.maximum((dep - mean_d) * lax.rsqrt(var_d + _EPS)
                      * gamma_t_ref[1:2, :] + beta_t_ref[1:2, :], 0.0)
    y = jnp.concatenate([y_i, y_d], axis=-1)                    # (ROWS, 2*LW)

    # ---- +/-1 wide-row shifts: sublane roll (XLU) + image-boundary mask ----
    row = lax.broadcasted_iota(jnp.int32, (rows, 1), 0) % h_g
    y_up = pltpu.roll(y, shift=1, axis=0) * (row != 0).astype(y.dtype)
    y_dn = (pltpu.roll(y, shift=rows - 1, axis=0)
            * (row != h_g - 1).astype(y.dtype))

    # ---- 3x3 conv (W- and fold-direction padding encoded in the weights) ---
    acc = jnp.dot(y_up, w_up_ref[...], preferred_element_type=jnp.float32)
    acc = acc + jnp.dot(y, w_mid_ref[...], preferred_element_type=jnp.float32)
    acc = acc + jnp.dot(y_dn, w_dn_ref[...], preferred_element_type=jnp.float32)

    # ---- bias + residual on the VPU -----------------------------------------
    out_ref[...] = (acc + bias_t_ref[...] + img).astype(out_ref.dtype)


# ---------------------------------------------------------------------------
# Host-side constant construction (build once, reuse across calls).
# ---------------------------------------------------------------------------
def _choose_fold(h, w, c, target_lanes=128):
    """Pack `fold` H-rows per wide row so the lane width reaches >= 128."""
    fold = 1
    while fold * w * c < target_lanes and h % (fold * 2) == 0:
        fold *= 2
    return fold


def _toeplitz_block(w_hwio_half, fold, w, c, d, dt):
    """(fold*W*C, fold*W*C) conv block for source wide-row offset d in {-1,0,1}."""
    gs = jnp.arange(fold).reshape(fold, 1, 1, 1)   # source sub-row
    ws = jnp.arange(w).reshape(1, w, 1, 1)         # source w
    gd = jnp.arange(fold).reshape(1, 1, fold, 1)   # dest sub-row
    wd = jnp.arange(w).reshape(1, 1, 1, w)         # dest w
    kh = gs + d * fold - gd + 1                    # conv tap indices
    kw = ws - wd + 1
    valid = ((kh >= 0) & (kh <= 2) & (kw >= 0) & (kw <= 2))
    blk = w_hwio_half[jnp.clip(kh, 0, 2), jnp.clip(kw, 0, 2)]  # (G,W,G,W,Ci,Co)
    blk = blk * valid[..., None, None].astype(dt)
    # rows = (gs, ws, ci), cols = (gd, wd, co)
    return blk.transpose(0, 1, 4, 2, 3, 5).reshape(fold * w * c, fold * w * c)


def _conv_weight(w_oihw, fold, w, c, d, dt):
    """(2*fold*W*C, fold*W*C): image-half rows stacked over depth-half rows."""
    w_img = jnp.transpose(w_oihw[:, :c].astype(dt), (2, 3, 1, 0))  # (3,3,C,C)
    w_dep = jnp.transpose(w_oihw[:, c:].astype(dt), (2, 3, 1, 0))
    return jnp.concatenate([_toeplitz_block(w_img, fold, w, c, d, dt),
                            _toeplitz_block(w_dep, fold, w, c, d, dt)], axis=0)


def make_res_part_constants(params, *, c, w, fold, dtype=jnp.float32):
    """Build the kernel's constant operands once (hoisted out of the step)."""
    gamma, beta, w_oihw, bias = params
    lw = fold * w * c
    gamma_t = jnp.stack([jnp.tile(gamma[:c].astype(dtype), fold * w),
                         jnp.tile(gamma[c:].astype(dtype), fold * w)])
    beta_t = jnp.stack([jnp.tile(beta[:c].astype(dtype), fold * w),
                        jnp.tile(beta[c:].astype(dtype), fold * w)])
    bias_t = jnp.tile(bias.astype(dtype), fold * w).reshape(1, lw)
    avg = jnp.kron(jnp.ones((fold * w, fold * w), dtype),
                   jnp.eye(c, dtype=dtype))                        # (LW, LW)
    w_up = _conv_weight(w_oihw, fold, w, c, -1, dtype)
    w_mid = _conv_weight(w_oihw, fold, w, c, 0, dtype)
    w_dn = _conv_weight(w_oihw, fold, w, c, +1, dtype)
    return (gamma_t, beta_t, avg, w_up, w_mid, w_dn, bias_t)


# ---------------------------------------------------------------------------
# Forward wrappers.
# ---------------------------------------------------------------------------
def _nchw_to_wide(t_nchw, fold):
    n, c, h, w = t_nchw.shape
    return jnp.transpose(t_nchw, (0, 2, 3, 1)).reshape(n * (h // fold),
                                                       fold * w * c)


def _wide_to_nchw(o_wide, n, c, h, w):
    return jnp.transpose(o_wide.reshape(n, h, w, c), (0, 3, 1, 2))


def res_part_forward_wide(img_wide, dep_wide, consts, *, n, c, h, w, fold):
    """Fused Res_part forward on wide (N*H/fold, fold*W*C) activations."""
    gamma_t, beta_t, avg, w_up, w_mid, w_dn, bias_t = consts
    h_g = h // fold
    rows = n * h_g
    lw = fold * w * c
    kernel = functools.partial(_res_part_kernel, h_g=h_g,
                               inv_count=1.0 / float(n * h * w))
    return pl.pallas_call(
        kernel,
        out_shape=jax.ShapeDtypeStruct((rows, lw), jnp.float32),
    )(img_wide, dep_wide, gamma_t, beta_t, avg, w_up, w_mid, w_dn, bias_t)


def res_part_apply(image_fea_nchw, depth_fea_nchw, consts, *, fold):
    """NCHW adapter around the wide-layout fused kernel."""
    n, c, h, w = image_fea_nchw.shape
    img_wide = _nchw_to_wide(image_fea_nchw.astype(jnp.float32), fold)
    dep_wide = _nchw_to_wide(depth_fea_nchw.astype(jnp.float32), fold)
    out_wide = res_part_forward_wide(img_wide, dep_wide, consts,
                                     n=n, c=c, h=h, w=w, fold=fold)
    return _wide_to_nchw(out_wide, n, c, h, w)


def res_part_reference(image_fea_nchw, depth_fea_nchw, params):
    """Pure-JAX reference (matches PyTorch training-mode forward)."""
    gamma, beta, w_oihw, bias = params
    x = jnp.concatenate([image_fea_nchw, depth_fea_nchw], axis=1)
    mean = jnp.mean(x, axis=(0, 2, 3), keepdims=True)
    var = jnp.mean((x - mean) ** 2, axis=(0, 2, 3), keepdims=True)
    y = (x - mean) / jnp.sqrt(var + _EPS)
    y = y * gamma.reshape(1, -1, 1, 1) + beta.reshape(1, -1, 1, 1)
    y = jnp.maximum(y, 0.0)
    conv = lax.conv_general_dilated(
        y, w_oihw, window_strides=(1, 1), padding=((1, 1), (1, 1)),
        dimension_numbers=("NCHW", "OIHW", "NCHW"))
    conv = conv + bias.reshape(1, -1, 1, 1)
    return image_fea_nchw + conv


if __name__ == "__main__":
    key = jax.random.PRNGKey(0)
    N, C, H, W = 2, 4, 16, 16            # in_channels = 4
    k1, k2, k3, k4, k5, k6 = jax.random.split(key, 6)

    image_fea = jax.random.normal(k1, (N, C, H, W), jnp.float32)
    depth_fea = jax.random.normal(k2, (N, C, H, W), jnp.float32)

    # Parameters (shapes from the module __init__):
    #   BatchNorm2d(2C): gamma/beta (2C,)
    #   Conv2d(2C->C, 3x3): weight (C, 2C, 3, 3), bias (C,)
    gamma = 1.0 + 0.1 * jax.random.normal(k3, (2 * C,), jnp.float32)
    beta = 0.1 * jax.random.normal(k4, (2 * C,), jnp.float32)
    w_oihw = 0.1 * jax.random.normal(k5, (C, 2 * C, 3, 3), jnp.float32)
    bias = 0.1 * jax.random.normal(k6, (C,), jnp.float32)
    params = (gamma, beta, w_oihw, bias)

    fold = _choose_fold(H, W, C)                         # 2 here -> 128 lanes
    consts = make_res_part_constants(params, c=C, w=W, fold=fold)  # hoisted

    fwd = jax.jit(functools.partial(res_part_apply, fold=fold))
    out = jax.block_until_ready(fwd(image_fea, depth_fea, consts))

    ref = res_part_reference(image_fea, depth_fea, params)
    assert out.shape == (N, C, H, W)
    max_err = float(jnp.max(jnp.abs(out - ref)))
    assert jnp.allclose(out, ref, atol=1e-4, rtol=1e-4), f"max_err={max_err}"
    print("KERNEL_OK")
</pallas_src>

<mosaic_0001>
module attributes {stable_mosaic.version = 11 : i64} {
  func.func @_res_part_kernel(%arg0: memref<16x128xf32, #tpu.memory_space<vmem>>, %arg1: memref<16x128xf32, #tpu.memory_space<vmem>>, %arg2: memref<2x128xf32, #tpu.memory_space<vmem>>, %arg3: memref<2x128xf32, #tpu.memory_space<vmem>>, %arg4: memref<128x128xf32, #tpu.memory_space<vmem>>, %arg5: memref<256x128xf32, #tpu.memory_space<vmem>>, %arg6: memref<256x128xf32, #tpu.memory_space<vmem>>, %arg7: memref<256x128xf32, #tpu.memory_space<vmem>>, %arg8: memref<1x128xf32, #tpu.memory_space<vmem>>, %arg9: memref<16x128xf32, #tpu.memory_space<vmem>>) attributes {dimension_semantics = [], scalar_prefetch = 0 : i64, scratch_operands = 0 : i64, tpu.core_type = #tpu.core_type<tc>} {
    %c0 = arith.constant 0 : index
    %c0_0 = arith.constant 0 : index
    %0 = vector.load %arg0[%c0, %c0_0] : memref<16x128xf32, #tpu.memory_space<vmem>>, vector<16x128xf32>
    %c0_1 = arith.constant 0 : index
    %c0_2 = arith.constant 0 : index
    %1 = vector.load %arg1[%c0_1, %c0_2] : memref<16x128xf32, #tpu.memory_space<vmem>>, vector<16x128xf32>
    %cst = arith.constant dense<0.000000e+00> : vector<128xf32>
    %2 = vector.multi_reduction <add>, %0, %cst [0] : vector<16x128xf32> to vector<128xf32>
    %3 = vector.shape_cast %2 : vector<128xf32> to vector<1x128xf32>
    %4 = arith.mulf %0, %0 : vector<16x128xf32>
    %cst_3 = arith.constant dense<0.000000e+00> : vector<128xf32>
    %5 = vector.multi_reduction <add>, %4, %cst_3 [0] : vector<16x128xf32> to vector<128xf32>
    %6 = vector.shape_cast %5 : vector<128xf32> to vector<1x128xf32>
    %cst_4 = arith.constant dense<0.000000e+00> : vector<128xf32>
    %7 = vector.multi_reduction <add>, %1, %cst_4 [0] : vector<16x128xf32> to vector<128xf32>
    %8 = vector.shape_cast %7 : vector<128xf32> to vector<1x128xf32>
    %9 = arith.mulf %1, %1 : vector<16x128xf32>
    %cst_5 = arith.constant dense<0.000000e+00> : vector<128xf32>
    %10 = vector.multi_reduction <add>, %9, %cst_5 [0] : vector<16x128xf32> to vector<128xf32>
    %11 = vector.shape_cast %10 : vector<128xf32> to vector<1x128xf32>
    %12 = tpu.concatenate %3, %6, %8, %11 in 0 : vector<1x128xf32>, vector<1x128xf32>, vector<1x128xf32>, vector<1x128xf32> -> vector<4x128xf32>
    %c0_6 = arith.constant 0 : index
    %c0_7 = arith.constant 0 : index
    %13 = vector.load %arg4[%c0_6, %c0_7] : memref<128x128xf32, #tpu.memory_space<vmem>>, vector<128x128xf32>
    %cst_8 = arith.constant dense<0.000000e+00> : vector<4x128xf32>
    %14 = tpu.matmul %12, %13, %cst_8 {dimension_numbers = #tpu.dot_dimension_numbers<[1], [0], [0], [1], [0, 0, 1, 1], [], []>} : vector<4x128xf32>, vector<128x128xf32>, vector<4x128xf32> -> vector<4x128xf32>
    %cst_9 = arith.constant 0.001953125 : f32
    %15 = vector.broadcast %cst_9 : f32 to vector<4x128xf32>
    %16 = arith.mulf %14, %15 : vector<4x128xf32>
    %17 = vector.extract_strided_slice %16 {offsets = [0, 0], sizes = [1, 128], strides = [1, 1]} : vector<4x128xf32> to vector<1x128xf32>
    %18 = vector.extract_strided_slice %16 {offsets = [1, 0], sizes = [1, 128], strides = [1, 1]} : vector<4x128xf32> to vector<1x128xf32>
    %19 = vector.extract_strided_slice %16 {offsets = [2, 0], sizes = [1, 128], strides = [1, 1]} : vector<4x128xf32> to vector<1x128xf32>
    %20 = vector.extract_strided_slice %16 {offsets = [3, 0], sizes = [1, 128], strides = [1, 1]} : vector<4x128xf32> to vector<1x128xf32>
    %21 = arith.mulf %17, %17 : vector<1x128xf32>
    %22 = arith.subf %18, %21 : vector<1x128xf32>
    %cst_10 = arith.constant 0.000000e+00 : f32
    %23 = vector.broadcast %cst_10 : f32 to vector<1x128xf32>
    %24 = arith.maximumf %22, %23 : vector<1x128xf32>
    %25 = arith.mulf %19, %19 : vector<1x128xf32>
    %26 = arith.subf %20, %25 : vector<1x128xf32>
    %cst_11 = arith.constant 0.000000e+00 : f32
    %27 = vector.broadcast %cst_11 : f32 to vector<1x128xf32>
    %28 = arith.maximumf %26, %27 : vector<1x128xf32>
    %29 = vector.broadcast %17 : vector<1x128xf32> to vector<16x128xf32>
    %30 = arith.subf %0, %29 : vector<16x128xf32>
    %cst_12 = arith.constant 9.99999974E-6 : f32
    %31 = vector.broadcast %cst_12 : f32 to vector<1x128xf32>
    %32 = arith.addf %24, %31 : vector<1x128xf32>
    %33 = math.rsqrt %32 : vector<1x128xf32>
    %34 = vector.broadcast %33 : vector<1x128xf32> to vector<16x128xf32>
    %35 = arith.mulf %30, %34 : vector<16x128xf32>
    %c0_13 = arith.constant 0 : index
    %c0_14 = arith.constant 0 : index
    %36 = vector.load %arg2[%c0_13, %c0_14] : memref<2x128xf32, #tpu.memory_space<vmem>>, vector<1x128xf32>
    %37 = vector.broadcast %36 : vector<1x128xf32> to vector<16x128xf32>
    %38 = arith.mulf %35, %37 : vector<16x128xf32>
    %c0_15 = arith.constant 0 : index
    %c0_16 = arith.constant 0 : index
    %39 = vector.load %arg3[%c0_15, %c0_16] : memref<2x128xf32, #tpu.memory_space<vmem>>, vector<1x128xf32>
    %40 = vector.broadcast %39 : vector<1x128xf32> to vector<16x128xf32>
    %41 = arith.addf %38, %40 : vector<16x128xf32>
    %cst_17 = arith.constant 0.000000e+00 : f32
    %42 = vector.broadcast %cst_17 : f32 to vector<16x128xf32>
    %43 = arith.maximumf %41, %42 : vector<16x128xf32>
    %44 = vector.broadcast %19 : vector<1x128xf32> to vector<16x128xf32>
    %45 = arith.subf %1, %44 : vector<16x128xf32>
    %cst_18 = arith.constant 9.99999974E-6 : f32
    %46 = vector.broadcast %cst_18 : f32 to vector<1x128xf32>
    %47 = arith.addf %28, %46 : vector<1x128xf32>
    %48 = math.rsqrt %47 : vector<1x128xf32>
    %49 = vector.broadcast %48 : vector<1x128xf32> to vector<16x128xf32>
    %50 = arith.mulf %45, %49 : vector<16x128xf32>
    %c1 = arith.constant 1 : index
    %c0_19 = arith.constant 0 : index
    %51 = vector.load %arg2[%c1, %c0_19] : memref<2x128xf32, #tpu.memory_space<vmem>>, vector<1x128xf32>
    %52 = vector.broadcast %51 : vector<1x128xf32> to vector<16x128xf32>
    %53 = arith.mulf %50, %52 : vector<16x128xf32>
    %c1_20 = arith.constant 1 : index
    %c0_21 = arith.constant 0 : index
    %54 = vector.load %arg3[%c1_20, %c0_21] : memref<2x128xf32, #tpu.memory_space<vmem>>, vector<1x128xf32>
    %55 = vector.broadcast %54 : vector<1x128xf32> to vector<16x128xf32>
    %56 = arith.addf %53, %55 : vector<16x128xf32>
    %cst_22 = arith.constant 0.000000e+00 : f32
    %57 = vector.broadcast %cst_22 : f32 to vector<16x128xf32>
    %58 = arith.maximumf %56, %57 : vector<16x128xf32>
    %59 = tpu.concatenate %43, %58 in 1 : vector<16x128xf32>, vector<16x128xf32> -> vector<16x256xf32>
    %60 = tpu.iota {dimensions = array<i32: 0>} : vector<16x1xi32>
    %c8_i32 = arith.constant 8 : i32
    %c0_i32 = arith.constant 0 : i32
    %61 = arith.cmpi eq, %c8_i32, %c0_i32 : i32
    %c1_i32 = arith.constant 1 : i32
    %62 = arith.select %61, %c1_i32, %c8_i32 : i32
    %63 = vector.broadcast %62 : i32 to vector<16x1xi32>
    %64 = arith.remsi %60, %63 : vector<16x1xi32>
    %c0_i32_23 = arith.constant 0 : i32
    %65 = vector.broadcast %c0_i32_23 : i32 to vector<16x1xi32>
    %66 = arith.cmpi ne, %64, %65 : vector<16x1xi32>
    %c0_i32_24 = arith.constant 0 : i32
    %67 = vector.broadcast %c0_i32_24 : i32 to vector<16x1xi32>
    %68 = arith.cmpi slt, %64, %67 : vector<16x1xi32>
    %c0_i32_25 = arith.constant 0 : i32
    %69 = arith.cmpi slt, %62, %c0_i32_25 : i32
    %70 = vector.broadcast %69 : i1 to vector<16x1xi1>
    %71 = vector.broadcast %70 : vector<16x1xi1> to vector<16x1xi1>
    %72 = arith.xori %68, %71 : vector<16x1xi1>
    %73 = arith.andi %72, %66 : vector<16x1xi1>
    %74 = vector.broadcast %62 : i32 to vector<16x1xi32>
    %75 = arith.addi %64, %74 : vector<16x1xi32>
    %76 = arith.select %73, %75, %64 : vector<16x1xi1>, vector<16x1xi32>
    %c1_i32_26 = arith.constant 1 : i32
    %77 = tpu.dynamic_rotate %59 by %c1_i32_26 dim 0 : vector<16x256xf32>, i32 -> vector<16x256xf32>
    %c0_i32_27 = arith.constant 0 : i32
    %78 = vector.broadcast %c0_i32_27 : i32 to vector<16x1xi32>
    %79 = arith.cmpi ne, %76, %78 : vector<16x1xi32>
    %80 = arith.extui %79 : vector<16x1xi1> to vector<16x1xi32>
    %81 = arith.sitofp %80 : vector<16x1xi32> to vector<16x1xf32>
    %82 = vector.broadcast %81 : vector<16x1xf32> to vector<16x256xf32>
    %83 = arith.mulf %77, %82 : vector<16x256xf32>
    %c15_i32 = arith.constant 15 : i32
    %84 = tpu.dynamic_rotate %59 by %c15_i32 dim 0 : vector<16x256xf32>, i32 -> vector<16x256xf32>
    %c7_i32 = arith.constant 7 : i32
    %85 = vector.broadcast %c7_i32 : i32 to vector<16x1xi32>
    %86 = arith.cmpi ne, %76, %85 : vector<16x1xi32>
    %87 = arith.extui %86 : vector<16x1xi1> to vector<16x1xi32>
    %88 = arith.sitofp %87 : vector<16x1xi32> to vector<16x1xf32>
    %89 = vector.broadcast %88 : vector<16x1xf32> to vector<16x256xf32>
    %90 = arith.mulf %84, %89 : vector<16x256xf32>
    %c0_28 = arith.constant 0 : index
    %c0_29 = arith.constant 0 : index
    %91 = vector.load %arg5[%c0_28, %c0_29] : memref<256x128xf32, #tpu.memory_space<vmem>>, vector<256x128xf32>
    %cst_30 = arith.constant dense<0.000000e+00> : vector<16x128xf32>
    %92 = tpu.matmul %83, %91, %cst_30 {dimension_numbers = #tpu.dot_dimension_numbers<[1], [0], [0], [1], [0, 0, 1, 1], [], []>} : vector<16x256xf32>, vector<256x128xf32>, vector<16x128xf32> -> vector<16x128xf32>
    %c0_31 = arith.constant 0 : index
    %c0_32 = arith.constant 0 : index
    %93 = vector.load %arg6[%c0_31, %c0_32] : memref<256x128xf32, #tpu.memory_space<vmem>>, vector<256x128xf32>
    %cst_33 = arith.constant dense<0.000000e+00> : vector<16x128xf32>
    %94 = tpu.matmul %59, %93, %cst_33 {dimension_numbers = #tpu.dot_dimension_numbers<[1], [0], [0], [1], [0, 0, 1, 1], [], []>} : vector<16x256xf32>, vector<256x128xf32>, vector<16x128xf32> -> vector<16x128xf32>
    %95 = arith.addf %92, %94 : vector<16x128xf32>
    %c0_34 = arith.constant 0 : index
    %c0_35 = arith.constant 0 : index
    %96 = vector.load %arg7[%c0_34, %c0_35] : memref<256x128xf32, #tpu.memory_space<vmem>>, vector<256x128xf32>
    %cst_36 = arith.constant dense<0.000000e+00> : vector<16x128xf32>
    %97 = tpu.matmul %90, %96, %cst_36 {dimension_numbers = #tpu.dot_dimension_numbers<[1], [0], [0], [1], [0, 0, 1, 1], [], []>} : vector<16x256xf32>, vector<256x128xf32>, vector<16x128xf32> -> vector<16x128xf32>
    %98 = arith.addf %95, %97 : vector<16x128xf32>
    %c0_37 = arith.constant 0 : index
    %c0_38 = arith.constant 0 : index
    %99 = vector.load %arg8[%c0_37, %c0_38] : memref<1x128xf32, #tpu.memory_space<vmem>>, vector<1x128xf32>
    %100 = vector.broadcast %99 : vector<1x128xf32> to vector<16x128xf32>
    %101 = arith.addf %98, %100 : vector<16x128xf32>
    %102 = arith.addf %101, %0 : vector<16x128xf32>
    %c0_39 = arith.constant 0 : index
    %c0_40 = arith.constant 0 : index
    %103 = vector.load %arg9[%c0_39, %c0_40] : memref<16x128xf32, #tpu.memory_space<vmem>>, vector<16x128xf32>
    tpu.vector_store %arg9[%c0_39, %c0_40], %102 {strides = array<i32>} : memref<16x128xf32, #tpu.memory_space<vmem>>, vector<16x128xf32>,
    return
  }
}

</mosaic_0001>

<llo_original>
// kernel: res_part_apply.1
$region0: #{res_part_apply.1}
  #allocation0 [shape = 'u32[]', space=smem, size = 0x4, offset = 0x4, fixed_abs, tag = 'smem constant byte address 0x4 - core index']
  #allocation1 [shape = 'u32[144,128]{1,0:T(1,128)}', space=vmem, size = 0x12000, scoped, tag = 'internal scratch']
  %s0 = inlined_call_operand.vmem [shape: f32[16,128], index: 0, kind: input, shape index: {}]
  %s1 = inlined_call_operand.vmem [shape: f32[16,128], index: 1, kind: input, shape index: {}]
  %s2 = inlined_call_operand.vmem [shape: f32[2,128], index: 2, kind: input, shape index: {}]
  %s3 = inlined_call_operand.vmem [shape: f32[2,128], index: 3, kind: input, shape index: {}]
  %s4 = inlined_call_operand.vmem [shape: f32[128,128], index: 4, kind: input, shape index: {}]
  %s5 = inlined_call_operand.vmem [shape: f32[256,128], index: 5, kind: input, shape index: {}]
  %s6 = inlined_call_operand.vmem [shape: f32[256,128], index: 6, kind: input, shape index: {}]
  %s7 = inlined_call_operand.vmem [shape: f32[256,128], index: 7, kind: input, shape index: {}]
  %s8 = inlined_call_operand.vmem [shape: f32[1,128], index: 8, kind: input, shape index: {}]
  %s9 = inlined_call_operand.vmem [shape: f32[16,128], index: 9, kind: output, shape index: {}]
  %s10 = sld [smem:[#allocation0]]
  $region46: #{res_part_apply.1} parent=0
    _
  %s12 = ssub.s32 1, %s10
  %s13 = scalar_select 0, %s12, %s10
  // Predicated region
  $region2: #{res_part_apply.1} parent=0 // pred_check
    _
  $region3: #{res_part_apply.1} parent=0 // pred_check_branch
    %15 = sbr.rel (0) target = $region5
  $region4: #{res_part_apply.1} parent=0 // pred_region
    _
  $region5: #{res_part_apply.1} parent=0 // pred_fallthru
    _
  // Predicated region
  $region6: #{res_part_apply.1} parent=0 // pred_check
    _
  $region7: #{res_part_apply.1} parent=0 // pred_check_branch
    %17 = sbr.rel (0) target = $region9
  $region8: #{res_part_apply.1} parent=0 // pred_region
    _
  $region9: #{res_part_apply.1} parent=0 // pred_fallthru
    _
  // Predicated region
  $region10: #{res_part_apply.1} parent=0 // pred_check
    _
  $region11: #{res_part_apply.1} parent=0 // pred_check_branch
    %19 = sbr.rel (0) target = $region13
  $region12: #{res_part_apply.1} parent=0 // pred_region
    _
  $region13: #{res_part_apply.1} parent=0 // pred_fallthru
    _
  // Predicated region
  $region14: #{res_part_apply.1} parent=0 // pred_check
    _
  $region15: #{res_part_apply.1} parent=0 // pred_check_branch
    %21 = sbr.rel (0) target = $region17
  $region16: #{res_part_apply.1} parent=0 // pred_region
    _
  $region17: #{res_part_apply.1} parent=0 // pred_fallthru
    _
  // Predicated region
  $region18: #{res_part_apply.1} parent=0 // pred_check
    _
  $region19: #{res_part_apply.1} parent=0 // pred_check_branch
    %23 = sbr.rel (0) target = $region21
  $region20: #{res_part_apply.1} parent=0 // pred_region
    _
  $region21: #{res_part_apply.1} parent=0 // pred_fallthru
    _
  // Predicated region
  $region22: #{res_part_apply.1} parent=0 // pred_check
    _
  $region23: #{res_part_apply.1} parent=0 // pred_check_branch
    %25 = sbr.rel (0) target = $region25
  $region24: #{res_part_apply.1} parent=0 // pred_region
    _
  $region25: #{res_part_apply.1} parent=0 // pred_fallthru
    _
  // Predicated region
  $region26: #{res_part_apply.1} parent=0 // pred_check
    _
  $region27: #{res_part_apply.1} parent=0 // pred_check_branch
    %27 = sbr.rel (0) target = $region29
  $region28: #{res_part_apply.1} parent=0 // pred_region
    _
  $region29: #{res_part_apply.1} parent=0 // pred_fallthru
    _
  // Predicated region
  $region30: #{res_part_apply.1} parent=0 // pred_check
    _
  $region31: #{res_part_apply.1} parent=0 // pred_check_branch
    %29 = sbr.rel (0) target = $region33
  $region32: #{res_part_apply.1} parent=0 // pred_region
    _
  $region33: #{res_part_apply.1} parent=0 // pred_fallthru
    _
  // Predicated region
  $region34: #{res_part_apply.1} parent=0 // pred_check
    _
  $region35: #{res_part_apply.1} parent=0 // pred_check_branch
    %31 = sbr.rel (0) target = $region37
  $region36: #{res_part_apply.1} parent=0 // pred_region
    _
  $region37: #{res_part_apply.1} parent=0 // pred_fallthru
    _
  %v32 = vld [vmem:[%s0] sm:$0xff]
  %v33 = vld [vmem:[%s0 + $0x8] sm:$0xff]
  %v34 = vld [vmem:[%s1] sm:$0xff]
  %v35 = vld [vmem:[%s1 + $0x8] sm:$0xff]
  %v36 = vadd.f32 %v32, %v33
  %v37 = vrot.slane %v36, 4
  %v38 = vadd.f32 %v36, %v37
  %v39 = vrot.slane %v38, 2
  %v40 = vadd.f32 %v38, %v39
  %v41 = vrot.slane %v40, 1
  %v42 = vadd.f32 %v40, %v41
  %v43 = vmul.f32 %v32, %v32
  %v44 = vmul.f32 %v33, %v33
  %v45 = vadd.f32 %v43, %v44
  %v46 = vrot.slane %v45, 4
  %v47 = vadd.f32 %v45, %v46
  %v48 = vrot.slane %v47, 2
  %v49 = vadd.f32 %v47, %v48
  %v50 = vrot.slane %v49, 1
  %v51 = vadd.f32 %v49, %v50
  %v52 = vadd.f32 %v34, %v35
  %v53 = vrot.slane %v52, 4
  %v54 = vadd.f32 %v52, %v53
  %v55 = vrot.slane %v54, 2
  %v56 = vadd.f32 %v54, %v55
  %v57 = vrot.slane %v56, 1
  %v58 = vadd.f32 %v56, %v57
  %v59 = vmul.f32 %v34, %v34
  %v60 = vmul.f32 %v35, %v35
  %v61 = vadd.f32 %v59, %v60
  %v62 = vrot.slane %v61, 4
  %v63 = vadd.f32 %v61, %v62
  %v64 = vrot.slane %v63, 2
  %v65 = vadd.f32 %v63, %v64
  %v66 = vrot.slane %v65, 1
  %v67 = vadd.f32 %v65, %v66
  %vm68 = vcmask 1040384
  %v69 = vsel %vm68, %v42, %v51
  %vm70 = vcmask 1041408
  %v71 = vsel %vm70, %v69, %v58
  %vm72 = vcmask 1042432
  %v73 = vsel %vm72, %v71, %v67
  %v74 = vld [vmem:[%s4] sm:$0xff]
  %v75 = vld [vmem:[%s4 + $0x8] sm:$0xff]
  %v76 = vld [vmem:[%s4 + $0x10] sm:$0xff]
  %v77 = vld [vmem:[%s4 + $0x18] sm:$0xff]
  %v78 = vld [vmem:[%s4 + $0x20] sm:$0xff]
  %v79 = vld [vmem:[%s4 + $0x28] sm:$0xff]
  %v80 = vld [vmem:[%s4 + $0x30] sm:$0xff]
  %v81 = vld [vmem:[%s4 + $0x38] sm:$0xff]
  %v82 = vld [vmem:[%s4 + $0x40] sm:$0xff]
  %v83 = vld [vmem:[%s4 + $0x48] sm:$0xff]
  %v84 = vld [vmem:[%s4 + $0x50] sm:$0xff]
  %v85 = vld [vmem:[%s4 + $0x58] sm:$0xff]
  %v86 = vld [vmem:[%s4 + $0x60] sm:$0xff]
  %v87 = vld [vmem:[%s4 + $0x68] sm:$0xff]
  %v88 = vld [vmem:[%s4 + $0x70] sm:$0xff]
  %v89 = vld [vmem:[%s4 + $0x78] sm:$0xff]
  %90 = vmatprep.subr.mxu0 0.0
  %91 = vmatpush1.msra.mxu0 %v74
  %92 = vmatprep.subr.mxu0 0.0
  %93 = vmatpush1.msra.mxu0 %v75
  %94 = vmatprep.subr.mxu0 0.0
  %95 = vmatpush1.msra.mxu0 %v76
  %96 = vmatprep.subr.mxu0 0.0
  %97 = vmatpush1.msra.mxu0 %v77
  %98 = vmatprep.subr.mxu0 0.0
  %99 = vmatpush1.msra.mxu0 %v78
  %100 = vmatprep.subr.mxu0 0.0
  %101 = vmatpush1.msra.mxu0 %v79
  %102 = vmatprep.subr.mxu0 0.0
  %103 = vmatpush1.msra.mxu0 %v80
  %104 = vmatprep.subr.mxu0 0.0
  %105 = vmatpush1.msra.mxu0 %v81
  %106 = vmatprep.subr.mxu0 0.0
  %107 = vmatpush1.msra.mxu0 %v82
  %108 = vmatprep.subr.mxu0 0.0
  %109 = vmatpush1.msra.mxu0 %v83
  %110 = vmatprep.subr.mxu0 0.0
  %111 = vmatpush1.msra.mxu0 %v84
  %112 = vmatprep.subr.mxu0 0.0
  %113 = vmatpush1.msra.mxu0 %v85
  %114 = vmatprep.subr.mxu0 0.0
  %115 = vmatpush1.msra.mxu0 %v86
  %116 = vmatprep.subr.mxu0 0.0
  %117 = vmatpush1.msra.mxu0 %v87
  %118 = vmatprep.subr.mxu0 0.0
  %119 = vmatpush1.msra.mxu0 %v88
  %120 = vmatprep.subr.mxu0 0.0
  %121 = vmatpush1.msra.mxu0 %v89
  %122 = vmatprep.subr.mxu0 0.0
  %123 = vmatpush1.msra.mxu0 0.0
  %124 = vmatprep.subr.mxu0 0.0
  %125 = vmatpush1.msra.mxu0 0.0
  %126 = vmatprep.subr.mxu0 0.0
  %127 = vmatpush1.msra.mxu0 0.0
  %128 = vmatprep.subr.mxu0 0.0
  %129 = vmatpush1.msra.mxu0 0.0
  %130 = vmatprep.subr.mxu0 0.0
  %131 = vmatpush1.msra.mxu0 0.0
  %132 = vmatprep.subr.mxu0 0.0
  %133 = vmatpush1.msra.mxu0 0.0
  %134 = vmatprep.subr.mxu0 0.0
  %135 = vmatpush1.msra.mxu0 0.0
  %136 = vmatprep.subr.mxu0 0.0
  %137 = vmatpush1.msra.mxu0 0.0
  %138 = vmatprep.subr.mxu0 0.0
  %139 = vmatpush1.msra.mxu0 0.0
  %140 = vmatprep.subr.mxu0 0.0
  %141 = vmatpush1.msra.mxu0 0.0
  %142 = vmatprep.subr.mxu0 0.0
  %143 = vmatpush1.msra.mxu0 0.0
  %144 = vmatprep.subr.mxu0 0.0
  %145 = vmatpush1.msra.mxu0 0.0
  %146 = vmatprep.subr.mxu0 0.0
  %147 = vmatpush1.msra.mxu0 0.0
  %148 = vmatprep.subr.mxu0 0.0
  %149 = vmatpush1.msra.mxu0 0.0
  %150 = vmatprep.subr.mxu0 0.0
  %151 = vmatpush1.msra.mxu0 0.0
  %152 = vmatprep.subr.mxu0 0.0
  %153 = vmatpush1.msra.mxu0 0.0
  %154 = vmatprep.mubr.f32.mxu0 0.0
  %155 = vmatmul.mubr.f32.gmra.mrb[0].mxu0 %v73
  %v156 = vpop.f32.mrb[0].mxu0
  %v157 = vadd.f32 0.0, %v156
  %v158 = vpop.f32.mrb[0].mxu0
  %159 = vdwg.mxu0
  %v160 = vmul.f32 %v157, 0.001953125
  %v161 = vmul.f32 %v160, %v160
  %v163 = vrot.slane %v161, 7
  %v165 = vsub.f32 %v160, %v163
  %v166 = vmax.f32 %v165, 0.0
  %v167 = vlaneseq
  %v168 = vshrl.u32 %v167, 7
  %v169 = vsub.s32 0, %v168
  %v170 = vrot.slane %v160, %v169
  %v171 = vsub.f32 %v32, %v170
  %v172 = vsub.f32 %v33, %v170
  %v173 = vadd.f32 %v166, 1e-05
  %v174 = vrsqrt.pop %v173
  %v175 = vlaneseq
  %v176 = vshrl.u32 %v175, 7
  %v177 = vsub.s32 1, %v176
  %v178 = vrot.slane %v174, %v177
  %v179 = vmul.f32 %v171, %v178
  %v180 = vmul.f32 %v172, %v178
  %v181 = vld [vmem:[%s2] sm:$0x1]
  %v182 = vlaneseq
  %v183 = vshrl.u32 %v182, 7
  %v184 = vsub.s32 0, %v183
  %v185 = vrot.slane %v181, %v184
  %v186 = vmul.f32 %v179, %v185
  %v187 = vmul.f32 %v180, %v185
  %v188 = vld [vmem:[%s3] sm:$0x1]
  %v189 = vlaneseq
  %v190 = vshrl.u32 %v189, 7
  %v191 = vsub.s32 0, %v190
  %v192 = vrot.slane %v188, %v191
  %v193 = vadd.f32 %v186, %v192
  %v194 = vadd.f32 %v187, %v192
  %v195 = vmax.f32 %v193, 0.0
  %v196 = vmax.f32 %v194, 0.0
  %v197 = vlaneseq
  %v198 = vshrl.u32 %v197, 7
  %v199 = vsub.s32 2, %v198
  %v200 = vrot.slane %v160, %v199
  %v201 = vsub.f32 %v34, %v200
  %v202 = vsub.f32 %v35, %v200
  %v203 = vlaneseq
  %v204 = vshrl.u32 %v203, 7
  %v205 = vsub.s32 3, %v204
  %v206 = vrot.slane %v174, %v205
  %v207 = vmul.f32 %v201, %v206
  %v208 = vmul.f32 %v202, %v206
  %v209 = vld [vmem:[%s2 + $0x1] sm:$0x1]
  %v210 = vlaneseq
  %v211 = vshrl.u32 %v210, 7
  %v212 = vsub.s32 0, %v211
  %v213 = vrot.slane %v209, %v212
  %v214 = vmul.f32 %v207, %v213
  %v215 = vmul.f32 %v208, %v213
  %v216 = vld [vmem:[%s3 + $0x1] sm:$0x1]
  %v217 = vlaneseq
  %v218 = vshrl.u32 %v217, 7
  %v219 = vsub.s32 0, %v218
  %v220 = vrot.slane %v216, %v219
  %v221 = vadd.f32 %v214, %v220
  %v222 = vadd.f32 %v215, %v220
  %v223 = vmax.f32 %v221, 0.0
  %v224 = vmax.f32 %v222, 0.0
  %v225 = vlaneseq
  %v226 = vshrl.u32 %v225, 7
  %v227 = vadd.s32 %v226, 8
  %vm228 = vcmp.lt.s32.totalorder %v226, 0
  %v229 = vsub.s32 0, %v226
  %v230 = vsel %vm228, %v229, %v226
  %v231 = vshrl.u32 %v230, 3
  %v232 = vand.u32 %v230, 7
  %v233 = vsub.s32 0, %v232
  %v234 = vsel %vm228, %v233, %v232
  %vm235 = vcmp.lt.s32.totalorder %v227, 0
  %v236 = vsub.s32 0, %v227
  %v237 = vsel %vm235, %v236, %v227
  %v238 = vshrl.u32 %v237, 3
  %v239 = vand.u32 %v237, 7
  %v240 = vsub.s32 0, %v239
  %v241 = vsel %vm235, %v240, %v239
  %vm242 = vcmp.ne.s32.totalorder %v234, 0
  %vm243 = vcmp.ne.s32.totalorder %v241, 0
  %vm244 = vcmp.lt.s32.totalorder %v234, 0
  %vm245 = vcmp.lt.s32.totalorder %v241, 0
  %vm246 = vmand %vm244, %vm242
  %vm247 = vmand %vm245, %vm243
  %v248 = vadd.s32 %v234, 8
  %v249 = vadd.s32 %v241, 8
  %v250 = vsel %vm246, %v248, %v234
  %v251 = vsel %vm247, %v249, %v241
  %v252 = vrot.slane %v195, 7
  %v253 = vrot.slane %v223, 7
  %v254 = vrot.slane %v196, 7
  %v255 = vrot.slane %v224, 7
  %vm256 = vcmp.lt.s32.totalorder %v226, 1
  %v257 = vsel %vm256, %v252, %v254
  %v258 = vsel %vm256, %v253, %v255
  %v259 = vsel %vm256, %v254, %v252
  %v260 = vsel %vm256, %v255, %v253
  %vm261 = vcmp.ne.s32.totalorder %v250, 0
  %vm262 = vcmp.ne.s32.totalorder %v251, 0
  %v263 = vsel %vm261, 1, 0
  %v264 = vsel %vm262, 1, 0
  %v265 = vcvt.s32.f32 %v263
  %v266 = vcvt.s32.f32 %v264
  %v267 = vmul.f32 %v259, %v265
  %v268 = vmul.f32 %v260, %v265
  %v269 = vmul.f32 %v257, %v266
  %v270 = vmul.f32 %v258, %v266
  %v271 = vrot.slane %v195, 1
  %v272 = vrot.slane %v223, 1
  %v273 = vrot.slane %v196, 1
  %v274 = vrot.slane %v224, 1
  %vm275 = vcmp.lt.s32.totalorder %v226, 7
  %v276 = vsel %vm275, %v271, %v273
  %v277 = vsel %vm275, %v272, %v274
  %v278 = vsel %vm275, %v273, %v271
  %v279 = vsel %vm275, %v274, %v272
  %vm280 = vcmp.ne.s32.totalorder %v250, 7
  %vm281 = vcmp.ne.s32.totalorder %v251, 7
  %v282 = vsel %vm280, 1, 0
  %v283 = vsel %vm281, 1, 0
  %v284 = vcvt.s32.f32 %v282
  %v285 = vcvt.s32.f32 %v283
  %v286 = vmul.f32 %v276, %v284
  %v287 = vmul.f32 %v277, %v284
  %v288 = vmul.f32 %v278, %v285
  %v289 = vmul.f32 %v279, %v285
  %v290 = vld [vmem:[%s5] sm:$0xff]
  %v291 = vld [vmem:[%s5 + $0x8] sm:$0xff]
  %v292 = vld [vmem:[%s5 + $0x10] sm:$0xff]
  %v293 = vld [vmem:[%s5 + $0x18] sm:$0xff]
  %v294 = vld [vmem:[%s5 + $0x20] sm:$0xff]
  %v295 = vld [vmem:[%s5 + $0x28] sm:$0xff]
  %v296 = vld [vmem:[%s5 + $0x30] sm:$0xff]
  %v297 = vld [vmem:[%s5 + $0x38] sm:$0xff]
  %v298 = vld [vmem:[%s5 + $0x40] sm:$0xff]
  %v299 = vld [vmem:[%s5 + $0x48] sm:$0xff]
  %v300 = vld [vmem:[%s5 + $0x50] sm:$0xff]
  %v301 = vld [vmem:[%s5 + $0x58] sm:$0xff]
  %v302 = vld [vmem:[%s5 + $0x60] sm:$0xff]
  %v303 = vld [vmem:[%s5 + $0x68] sm:$0xff]
  %v304 = vld [vmem:[%s5 + $0x70] sm:$0xff]
  %v305 = vld [vmem:[%s5 + $0x78] sm:$0xff]
  %v306 = vld [vmem:[%s5 + $0x80] sm:$0xff]
  %v307 = vld [vmem:[%s5 + $0x88] sm:$0xff]
  %v308 = vld [vmem:[%s5 + $0x90] sm:$0xff]
  %v309 = vld [vmem:[%s5 + $0x98] sm:$0xff]
  %v310 = vld [vmem:[%s5 + $0xa0] sm:$0xff]
  %v311 = vld [vmem:[%s5 + $0xa8] sm:$0xff]
  %v312 = vld [vmem:[%s5 + $0xb0] sm:$0xff]
  %v313 = vld [vmem:[%s5 + $0xb8] sm:$0xff]
  %v314 = vld [vmem:[%s5 + $0xc0] sm:$0xff]
  %v315 = vld [vmem:[%s5 + $0xc8] sm:$0xff]
  %v316 = vld [vmem:[%s5 + $0xd0] sm:$0xff]
  %v317 = vld [vmem:[%s5 + $0xd8] sm:$0xff]
  %v318 = vld [vmem:[%s5 + $0xe0] sm:$0xff]
  %v319 = vld [vmem:[%s5 + $0xe8] sm:$0xff]
  %v320 = vld [vmem:[%s5 + $0xf0] sm:$0xff]
  %v321 = vld [vmem:[%s5 + $0xf8] sm:$0xff]
  %v322 = vld [vmem:[%s6] sm:$0xff]
  %v323 = vld [vmem:[%s6 + $0x8] sm:$0xff]
  %v324 = vld [vmem:[%s6 + $0x10] sm:$0xff]
  %v325 = vld [vmem:[%s6 + $0x18] sm:$0xff]
  %v326 = vld [vmem:[%s6 + $0x20] sm:$0xff]
  %v327 = vld [vmem:[%s6 + $0x28] sm:$0xff]
  %v328 = vld [vmem:[%s6 + $0x30] sm:$0xff]
  %v329 = vld [vmem:[%s6 + $0x38] sm:$0xff]
  %v330 = vld [vmem:[%s6 + $0x40] sm:$0xff]
  %v331 = vld [vmem:[%s6 + $0x48] sm:$0xff]
  %v332 = vld [vmem:[%s6 + $0x50] sm:$0xff]
  %v333 = vld [vmem:[%s6 + $0x58] sm:$0xff]
  %v334 = vld [vmem:[%s6 + $0x60] sm:$0xff]
  %v335 = vld [vmem:[%s6 + $0x68] sm:$0xff]
  %v336 = vld [vmem:[%s6 + $0x70] sm:$0xff]
  %v337 = vld [vmem:[%s6 + $0x78] sm:$0xff]
  %v338 = vld [vmem:[%s6 + $0x80] sm:$0xff]
  %v339 = vld [vmem:[%s6 + $0x88] sm:$0xff]
  %v340 = vld [vmem:[%s6 + $0x90] sm:$0xff]
  %v341 = vld [vmem:[%s6 + $0x98] sm:$0xff]
  %v342 = vld [vmem:[%s6 + $0xa0] sm:$0xff]
  %v343 = vld [vmem:[%s6 + $0xa8] sm:$0xff]
  %v344 = vld [vmem:[%s6 + $0xb0] sm:$0xff]
  %v345 = vld [vmem:[%s6 + $0xb8] sm:$0xff]
  %v346 = vld [vmem:[%s6 + $0xc0] sm:$0xff]
  %v347 = vld [vmem:[%s6 + $0xc8] sm:$0xff]
  %v348 = vld [vmem:[%s6 + $0xd0] sm:$0xff]
  %v349 = vld [vmem:[%s6 + $0xd8] sm:$0xff]
  %v350 = vld [vmem:[%s6 + $0xe0] sm:$0xff]
  %v351 = vld [vmem:[%s6 + $0xe8] sm:$0xff]
  %v352 = vld [vmem:[%s6 + $0xf0] sm:$0xff]
  %v353 = vld [vmem:[%s6 + $0xf8] sm:$0xff]
  %354 = vmatprep.subr.mxu0 0.0
  %355 = vmatpush1.msra.mxu0 %v322
  %356 = vmatprep.subr.mxu0 0.0
  %357 = vmatpush1.msra.mxu0 %v323
  %358 = vmatprep.subr.mxu0 0.0
  %359 = vmatpush1.msra.mxu0 %v324
  %360 = vmatprep.subr.mxu0 0.0
  %361 = vmatpush1.msra.mxu0 %v325
  %362 = vmatprep.subr.mxu0 0.0
  %363 = vmatpush1.msra.mxu0 %v326
  %364 = vmatprep.subr.mxu0 0.0
  %365 = vmatpush1.msra.mxu0 %v327
  %366 = vmatprep.subr.mxu0 0.0
  %367 = vmatpush1.msra.mxu0 %v328
  %368 = vmatprep.subr.mxu0 0.0
  %369 = vmatpush1.msra.mxu0 %v329
  %370 = vmatprep.subr.mxu0 0.0
  %371 = vmatpush1.msra.mxu0 %v330
  %372 = vmatprep.subr.mxu0 0.0
  %373 = vmatpush1.msra.mxu0 %v331
  %374 = vmatprep.subr.mxu0 0.0
  %375 = vmatpush1.msra.mxu0 %v332
  %376 = vmatprep.subr.mxu0 0.0
  %377 = vmatpush1.msra.mxu0 %v333
  %378 = vmatprep.subr.mxu0 0.0
  %379 = vmatpush1.msra.mxu0 %v334
  %380 = vmatprep.subr.mxu0 0.0
  %381 = vmatpush1.msra.mxu0 %v335
  %382 = vmatprep.subr.mxu0 0.0
  %383 = vmatpush1.msra.mxu0 %v336
  %384 = vmatprep.subr.mxu0 0.0
  %385 = vmatpush1.msra.mxu0 %v337
  %386 = vmatprep.subr.mxu0 0.0
  %387 = vmatpush1.msra.mxu0 %v338
  %388 = vmatprep.subr.mxu0 0.0
  %389 = vmatpush1.msra.mxu0 %v339
  %390 = vmatprep.subr.mxu0 0.0
  %391 = vmatpush1.msra.mxu0 %v340
  %392 = vmatprep.subr.mxu0 0.0
  %393 = vmatpush1.msra.mxu0 %v341
  %394 = vmatprep.subr.mxu0 0.0
  %395 = vmatpush1.msra.mxu0 %v342
  %396 = vmatprep.subr.mxu0 0.0
  %397 = vmatpush1.msra.mxu0 %v343
  %398 = vmatprep.subr.mxu0 0.0
  %399 = vmatpush1.msra.mxu0 %v344
  %400 = vmatprep.subr.mxu0 0.0
  %401 = vmatpush1.msra.mxu0 %v345
  %402 = vmatprep.subr.mxu0 0.0
  %403 = vmatpush1.msra.mxu0 %v346
  %404 = vmatprep.subr.mxu0 0.0
  %405 = vmatpush1.msra.mxu0 %v347
  %406 = vmatprep.subr.mxu0 0.0
  %407 = vmatpush1.msra.mxu0 %v348
  %408 = vmatprep.subr.mxu0 0.0
  %409 = vmatpush1.msra.mxu0 %v349
  %410 = vmatprep.subr.mxu0 0.0
  %411 = vmatpush1.msra.mxu0 %v350
  %412 = vmatprep.subr.mxu0 0.0
  %413 = vmatpush1.msra.mxu0 %v351
  %414 = vmatprep.subr.mxu0 0.0
  %415 = vmatpush1.msra.mxu0 %v352
  %416 = vmatprep.subr.mxu0 0.0
  %417 = vmatpush1.msra.mxu0 %v353
  %418 = vmatprep.mubr.f32.mxu0 %v223
  %419 = vmatmul.mubr.f32.gmra.mrb[0].mxu0 %v195
  %v420 = vpop.f32.mrb[0].mxu0
  %v421 = vadd.f32 0.0, %v420
  %v422 = vpop.f32.mrb[0].mxu0
  %423 = vmatprep.mubr.f32.mxu0 %v224
  %424 = vmatmul.mubr.f32.gmra.mrb[0].mxu0 %v196
  %v425 = vpop.f32.mrb[0].mxu0
  %v426 = vadd.f32 0.0, %v425
  %v427 = vpop.f32.mrb[0].mxu0
  %428 = vdwg.mxu0
  %429 = vmatprep.subr.mxu0 0.0
  %430 = vmatpush1.msra.mxu0 %v290
  %431 = vmatprep.subr.mxu0 0.0
  %432 = vmatpush1.msra.mxu0 %v291
  %433 = vmatprep.subr.mxu0 0.0
  %434 = vmatpush1.msra.mxu0 %v292
  %435 = vmatprep.subr.mxu0 0.0
  %436 = vmatpush1.msra.mxu0 %v293
  %437 = vmatprep.subr.mxu0 0.0
  %438 = vmatpush1.msra.mxu0 %v294
  %439 = vmatprep.subr.mxu0 0.0
  %440 = vmatpush1.msra.mxu0 %v295
  %441 = vmatprep.subr.mxu0 0.0
  %442 = vmatpush1.msra.mxu0 %v296
  %443 = vmatprep.subr.mxu0 0.0
  %444 = vmatpush1.msra.mxu0 %v297
  %445 = vmatprep.subr.mxu0 0.0
  %446 = vmatpush1.msra.mxu0 %v298
  %447 = vmatprep.subr.mxu0 0.0
  %448 = vmatpush1.msra.mxu0 %v299
  %449 = vmatprep.subr.mxu0 0.0
  %450 = vmatpush1.msra.mxu0 %v300
  %451 = vmatprep.subr.mxu0 0.0
  %452 = vmatpush1.msra.mxu0 %v301
  %453 = vmatprep.subr.mxu0 0.0
  %454 = vmatpush1.msra.mxu0 %v302
  %455 = vmatprep.subr.mxu0 0.0
  %456 = vmatpush1.msra.mxu0 %v303
  %457 = vmatprep.subr.mxu0 0.0
  %458 = vmatpush1.msra.mxu0 %v304
  %459 = vmatprep.subr.mxu0 0.0
  %460 = vmatpush1.msra.mxu0 %v305
  %461 = vmatprep.subr.mxu0 0.0
  %462 = vmatpush1.msra.mxu0 %v306
  %463 = vmatprep.subr.mxu0 0.0
  %464 = vmatpush1.msra.mxu0 %v307
  %465 = vmatprep.subr.mxu0 0.0
  %466 = vmatpush1.msra.mxu0 %v308
  %467 = vmatprep.subr.mxu0 0.0
  %468 = vmatpush1.msra.mxu0 %v309
  %469 = vmatprep.subr.mxu0 0.0
  %470 = vmatpush1.msra.mxu0 %v310
  %471 = vmatprep.subr.mxu0 0.0
  %472 = vmatpush1.msra.mxu0 %v311
  %473 = vmatprep.subr.mxu0 0.0
  %474 = vmatpush1.msra.mxu0 %v312
  %475 = vmatprep.subr.mxu0 0.0
  %476 = vmatpush1.msra.mxu0 %v313
  %477 = vmatprep.subr.mxu0 0.0
  %478 = vmatpush1.msra.mxu0 %v314
  %479 = vmatprep.subr.mxu0 0.0
  %480 = vmatpush1.msra.mxu0 %v315
  %481 = vmatprep.subr.mxu0 0.0
  %482 = vmatpush1.msra.mxu0 %v316
  %483 = vmatprep.subr.mxu0 0.0
  %484 = vmatpush1.msra.mxu0 %v317
  %485 = vmatprep.subr.mxu0 0.0
  %486 = vmatpush1.msra.mxu0 %v318
  %487 = vmatprep.subr.mxu0 0.0
  %488 = vmatpush1.msra.mxu0 %v319
  %489 = vmatprep.subr.mxu0 0.0
  %490 = vmatpush1.msra.mxu0 %v320
  %491 = vmatprep.subr.mxu0 0.0
  %492 = vmatpush1.msra.mxu0 %v321
  %493 = vmatprep.mubr.f32.mxu0 %v268
  %494 = vmatmul.mubr.f32.gmra.mrb[0].mxu0 %v267
  %v495 = vpop.f32.mrb[0].mxu0
  %v496 = vadd.f32 %v421, %v495
  %v497 = vpop.f32.mrb[0].mxu0
  %498 = vmatprep.mubr.f32.mxu0 %v270
  %499 = vmatmul.mubr.f32.gmra.mrb[0].mxu0 %v269
  %v500 = vpop.f32.mrb[0].mxu0
  %v501 = vadd.f32 %v426, %v500
  %v502 = vpop.f32.mrb[0].mxu0
  %503 = vdwg.mxu0
  %v504 = vld [vmem:[%s7] sm:$0xff]
  %v505 = vld [vmem:[%s7 + $0x8] sm:$0xff]
  %v506 = vld [vmem:[%s7 + $0x10] sm:$0xff]
  %v507 = vld [vmem:[%s7 + $0x18] sm:$0xff]
  %v508 = vld [vmem:[%s7 + $0x20] sm:$0xff]
  %v509 = vld [vmem:[%s7 + $0x28] sm:$0xff]
  %v510 = vld [vmem:[%s7 + $0x30] sm:$0xff]
  %v511 = vld [vmem:[%s7 + $0x38] sm:$0xff]
  %v512 = vld [vmem:[%s7 + $0x40] sm:$0xff]
  %v513 = vld [vmem:[%s7 + $0x48] sm:$0xff]
  %v514 = vld [vmem:[%s7 + $0x50] sm:$0xff]
  %v515 = vld [vmem:[%s7 + $0x58] sm:$0xff]
  %v516 = vld [vmem:[%s7 + $0x60] sm:$0xff]
  %v517 = vld [vmem:[%s7 + $0x68] sm:$0xff]
  %v518 = vld [vmem:[%s7 + $0x70] sm:$0xff]
  %v519 = vld [vmem:[%s7 + $0x78] sm:$0xff]
  %v520 = vld [vmem:[%s7 + $0x80] sm:$0xff]
  %v521 = vld [vmem:[%s7 + $0x88] sm:$0xff]
  %v522 = vld [vmem:[%s7 + $0x90] sm:$0xff]
  %v523 = vld [vmem:[%s7 + $0x98] sm:$0xff]
  %v524 = vld [vmem:[%s7 + $0xa0] sm:$0xff]
  %v525 = vld [vmem:[%s7 + $0xa8] sm:$0xff]
  %v526 = vld [vmem:[%s7 + $0xb0] sm:$0xff]
  %v527 = vld [vmem:[%s7 + $0xb8] sm:$0xff]
  %v528 = vld [vmem:[%s7 + $0xc0] sm:$0xff]
  %v529 = vld [vmem:[%s7 + $0xc8] sm:$0xff]
  %v530 = vld [vmem:[%s7 + $0xd0] sm:$0xff]
  %v531 = vld [vmem:[%s7 + $0xd8] sm:$0xff]
  %v532 = vld [vmem:[%s7 + $0xe0] sm:$0xff]
  %v533 = vld [vmem:[%s7 + $0xe8] sm:$0xff]
  %v534 = vld [vmem:[%s7 + $0xf0] sm:$0xff]
  %v535 = vld [vmem:[%s7 + $0xf8] sm:$0xff]
  %536 = vmatprep.subr.mxu0 0.0
  %537 = vmatpush1.msra.mxu0 %v504
  %538 = vmatprep.subr.mxu0 0.0
  %539 = vmatpush1.msra.mxu0 %v505
  %540 = vmatprep.subr.mxu0 0.0
  %541 = vmatpush1.msra.mxu0 %v506
  %542 = vmatprep.subr.mxu0 0.0
  %543 = vmatpush1.msra.mxu0 %v507
  %544 = vmatprep.subr.mxu0 0.0
  %545 = vmatpush1.msra.mxu0 %v508
  %546 = vmatprep.subr.mxu0 0.0
  %547 = vmatpush1.msra.mxu0 %v509
  %548 = vmatprep.subr.mxu0 0.0
  %549 = vmatpush1.msra.mxu0 %v510
  %550 = vmatprep.subr.mxu0 0.0
  %551 = vmatpush1.msra.mxu0 %v511
  %552 = vmatprep.subr.mxu0 0.0
  %553 = vmatpush1.msra.mxu0 %v512
  %554 = vmatprep.subr.mxu0 0.0
  %555 = vmatpush1.msra.mxu0 %v513
  %556 = vmatprep.subr.mxu0 0.0
  %557 = vmatpush1.msra.mxu0 %v514
  %558 = vmatprep.subr.mxu0 0.0
  %559 = vmatpush1.msra.mxu0 %v515
  %560 = vmatprep.subr.mxu0 0.0
  %561 = vmatpush1.msra.mxu0 %v516
  %562 = vmatprep.subr.mxu0 0.0
  %563 = vmatpush1.msra.mxu0 %v517
  %564 = vmatprep.subr.mxu0 0.0
  %565 = vmatpush1.msra.mxu0 %v518
  %566 = vmatprep.subr.mxu0 0.0
  %567 = vmatpush1.msra.mxu0 %v519
  %568 = vmatprep.subr.mxu0 0.0
  %569 = vmatpush1.msra.mxu0 %v520
  %570 = vmatprep.subr.mxu0 0.0
  %571 = vmatpush1.msra.mxu0 %v521
  %572 = vmatprep.subr.mxu0 0.0
  %573 = vmatpush1.msra.mxu0 %v522
  %574 = vmatprep.subr.mxu0 0.0
  %575 = vmatpush1.msra.mxu0 %v523
  %576 = vmatprep.subr.mxu0 0.0
  %577 = vmatpush1.msra.mxu0 %v524
  %578 = vmatprep.subr.mxu0 0.0
  %579 = vmatpush1.msra.mxu0 %v525
  %580 = vmatprep.subr.mxu0 0.0
  %581 = vmatpush1.msra.mxu0 %v526
  %582 = vmatprep.subr.mxu0 0.0
  %583 = vmatpush1.msra.mxu0 %v527
  %584 = vmatprep.subr.mxu0 0.0
  %585 = vmatpush1.msra.mxu0 %v528
  %586 = vmatprep.subr.mxu0 0.0
  %587 = vmatpush1.msra.mxu0 %v529
  %588 = vmatprep.subr.mxu0 0.0
  %589 = vmatpush1.msra.mxu0 %v530
  %590 = vmatprep.subr.mxu0 0.0
  %591 = vmatpush1.msra.mxu0 %v531
  %592 = vmatprep.subr.mxu0 0.0
  %593 = vmatpush1.msra.mxu0 %v532
  %594 = vmatprep.subr.mxu0 0.0
  %595 = vmatpush1.msra.mxu0 %v533
  %596 = vmatprep.subr.mxu0 0.0
  %597 = vmatpush1.msra.mxu0 %v534
  %598 = vmatprep.subr.mxu0 0.0
  %599 = vmatpush1.msra.mxu0 %v535
  %600 = vmatprep.mubr.f32.mxu0 %v287
  %601 = vmatmul.mubr.f32.gmra.mrb[0].mxu0 %v286
  %v602 = vpop.f32.mrb[0].mxu0
  %v603 = vadd.f32 0.0, %v602
  %v604 = vpop.f32.mrb[0].mxu0
  %605 = vmatprep.mubr.f32.mxu0 %v289
  %606 = vmatmul.mubr.f32.gmra.mrb[0].mxu0 %v288
  %v607 = vpop.f32.mrb[0].mxu0
  %v608 = vadd.f32 0.0, %v607
  %v609 = vpop.f32.mrb[0].mxu0
  %610 = vdwg.mxu0
  %v611 = vadd.f32 %v496, %v603
  %v612 = vadd.f32 %v501, %v608
  %v613 = vld [vmem:[%s8] sm:$0x1]
  %v615 = vlaneseq
  %v616 = vshrl.u32 %v615, 7
  %v617 = vsub.s32 0, %v616
  %v618 = vrot.slane %v613, %v617
  %v620 = vadd.f32 %v611, %v618
  %v621 = vadd.f32 %v612, %v618
  %v622 = vadd.f32 %v620, %v32
  %v623 = vadd.f32 %v621, %v33
  %624 = vst [vmem:[%s9] sm:$0xff] %v622
  %625 = vst [vmem:[%s9 + $0x8] sm:$0xff] %v623
  // Predicated region
  $region38: #{res_part_apply.1} parent=0 // pred_check
    _
  $region39: #{res_part_apply.1} parent=0 // pred_check_branch
    %627 = sbr.rel (0) target = $region41
  $region40: #{res_part_apply.1} parent=0 // pred_region
    _
  $region41: #{res_part_apply.1} parent=0 // pred_fallthru
    _
  // Predicated region
  $region42: #{res_part_apply.1} parent=0 // pred_check
    _
  $region43: #{res_part_apply.1} parent=0 // pred_check_branch
    %629 = sbr.rel (0) target = $region45
  $region44: #{res_part_apply.1} parent=0 // pred_region
    _
  $region45: #{res_part_apply.1} parent=0 // pred_fallthru
    _

</llo_original>
